<compile_context>
chip_gen: v7x
topology: tpu7x:2x2x1
jax: 0.10.0
libtpu: 0.0.40
codegen_flags: <defaults>
</compile_context>

<pallas_src>
import jax
import jax.numpy as jnp
from jax.experimental import pallas as pl
from jax.experimental.pallas import tpu as pltpu


def _round_up(x, m):
    return ((x + m - 1) // m) * m


def _make_tdecoder_kernel(num_hidden, h_dim):
    """Fused kernel body for a fixed number of hidden LinearReLU layers."""
    inv_h = 1.0 / float(h_dim)

    def kernel(*refs):
        # refs layout:
        #   refs[0]                     : z tile          (TB, z_dim)
        #   refs[1 : 1+num_hidden]      : hidden weights  (in_dim, h_dim) each
        #   refs[1+num_hidden]          : hidden biases   (num_hidden, h_dim)
        #   refs[2+num_hidden]          : W_out^T         (h_dim, x_pad)
        #   refs[3+num_hidden]          : b_out           (1, x_pad)
        #   refs[4+num_hidden]          : out tile        (TB, x_pad)
        z_ref = refs[0]
        w_refs = refs[1:1 + num_hidden]
        b_hidden_ref = refs[1 + num_hidden]
        w_out_ref = refs[2 + num_hidden]
        b_out_ref = refs[3 + num_hidden]
        out_ref = refs[4 + num_hidden]

        x = z_ref[...]  # already f32; no redundant cast

        for layer in range(num_hidden):
            w = w_refs[layer][...]                       # (in_dim, h_dim), pre-transposed
            b = b_hidden_ref[pl.ds(layer, 1), :]         # (1, h_dim)
            # Linear (MXU, canonical layout — no transpose in kernel)
            h = jnp.dot(x, w, preferred_element_type=jnp.float32) + b
            # LayerNorm (eps=1e-5, no affine) — one-pass statistics:
            s = jnp.sum(h, axis=-1, keepdims=True)
            ss = jnp.sum(h * h, axis=-1, keepdims=True)
            mean = s * inv_h
            var = jnp.maximum(ss * inv_h - mean * mean, 0.0)
            h = (h - mean) * jax.lax.rsqrt(var + 1e-5)
            # ReLU
            x = jnp.maximum(h, 0.0)

        # Final Linear into the lane-dense padded output width.
        ld = (jnp.dot(x, w_out_ref[...], preferred_element_type=jnp.float32)
              + b_out_ref[...])

        # Softplus (beta=1, threshold=20), matching torch.nn.Softplus.
        sp = jnp.log1p(jnp.exp(jnp.minimum(ld, 20.0)))
        out_ref[...] = jnp.where(ld > 20.0, ld, sp).astype(out_ref.dtype)

    return kernel


def tdecoder_forward(z, hidden_params, out_w, out_b, *, batch_tile=128):
    """Run the fused TDecoder forward pass as one batch-tiled Pallas kernel.

    Args:
      z: (B, z_dim) float32
      hidden_params: list of (W, b) in PyTorch convention, W: (out, in), b: (out,)
                     (first layer: z_dim -> h_dim, rest: h_dim -> h_dim)
      out_w: (x_dim, h_dim), out_b: (x_dim,)
    Returns:
      (B, x_dim) float32
    """
    B, z_dim = z.shape
    x_dim, h_dim = out_w.shape
    num_hidden = len(hidden_params)

    # --- one-time parameter preprocessing (outside the kernel) -------------
    # Pre-transpose weights to (in_dim, out_dim): MXU sees [K-sublane, N-lane].
    ws = [jnp.asarray(w, jnp.float32).T for w, _ in hidden_params]
    # Pack all hidden biases into one (num_hidden, h_dim) slab (fewer DMAs).
    b_hidden = jnp.stack(
        [jnp.asarray(b, jnp.float32) for _, b in hidden_params], axis=0)
    # Lane-dense output: pad x_dim up to a multiple of 128 with zero columns.
    x_pad = _round_up(x_dim, 128)
    w_out_t = jnp.zeros((h_dim, x_pad), jnp.float32).at[:, :x_dim].set(
        jnp.asarray(out_w, jnp.float32).T)
    b_out_p = jnp.zeros((1, x_pad), jnp.float32).at[:, :x_dim].set(
        jnp.asarray(out_b, jnp.float32).reshape(1, -1))

    # --- batch tiling -------------------------------------------------------
    # TB == B for small batches (block == full dim), otherwise a multiple of 8.
    TB = min(batch_tile, _round_up(B, 8))
    B_pad = _round_up(B, TB)
    z_in = jnp.asarray(z, jnp.float32)
    if B_pad != B:
        z_in = jnp.zeros((B_pad, z_dim), jnp.float32).at[:B].set(z_in)
    grid = (B_pad // TB,)

    flat_inputs = [z_in] + ws + [b_hidden, w_out_t, b_out_p]

    # Explicit specs (no late-binding lambda-over-loop-variable bugs).
    in_specs = [pl.BlockSpec((TB, z_dim), lambda i: (i, 0))]          # batch-tiled
    for w in ws:
        in_specs.append(pl.BlockSpec(w.shape, lambda i: (0, 0)))      # resident
    in_specs.append(pl.BlockSpec(b_hidden.shape, lambda i: (0, 0)))   # resident
    in_specs.append(pl.BlockSpec(w_out_t.shape, lambda i: (0, 0)))    # resident
    in_specs.append(pl.BlockSpec(b_out_p.shape, lambda i: (0, 0)))    # resident
    out_spec = pl.BlockSpec((TB, x_pad), lambda i: (i, 0))            # lane-dense

    kernel = _make_tdecoder_kernel(num_hidden, h_dim)

    out_padded = pl.pallas_call(
        kernel,
        out_shape=jax.ShapeDtypeStruct((B_pad, x_pad), jnp.float32),
        grid_spec=pltpu.PrefetchScalarGridSpec(
            num_scalar_prefetch=0,
            grid=grid,
            in_specs=in_specs,
            out_specs=out_spec,
        ),
        compiler_params=pltpu.CompilerParams(
            dimension_semantics=("parallel",),
        ),
    )(*flat_inputs)

    return out_padded[:B, :x_dim]


def init_tdecoder_params(key, num_h_layers, z_dim, h_dim, x_dim):
    """Deterministic synthetic parameter init (PyTorch Linear-like scaling)."""
    hidden_params = []
    dims = [(z_dim, h_dim)] + [(h_dim, h_dim)] * (num_h_layers - 1)
    for in_dim, out_dim in dims:
        key, kw, kb = jax.random.split(key, 3)
        bound = 1.0 / jnp.sqrt(in_dim)
        w = jax.random.uniform(kw, (out_dim, in_dim), jnp.float32, -bound, bound)
        b = jax.random.uniform(kb, (out_dim,), jnp.float32, -bound, bound)
        hidden_params.append((w, b))
    key, kw, kb = jax.random.split(key, 3)
    bound = 1.0 / jnp.sqrt(h_dim)
    out_w = jax.random.uniform(kw, (x_dim, h_dim), jnp.float32, -bound, bound)
    out_b = jax.random.uniform(kb, (x_dim,), jnp.float32, -bound, bound)
    return hidden_params, out_w, out_b


def tdecoder_reference(z, hidden_params, out_w, out_b):
    """Pure-JAX reference matching the PyTorch module (two-pass LayerNorm)."""
    x = z
    for w, b in hidden_params:
        h = x @ w.T + b
        mean = jnp.mean(h, axis=-1, keepdims=True)
        var = jnp.mean((h - mean) ** 2, axis=-1, keepdims=True)
        h = (h - mean) / jnp.sqrt(var + 1e-5)
        x = jnp.maximum(h, 0.0)
    ld = x @ out_w.T + out_b
    return jnp.where(ld > 20.0, ld, jnp.log1p(jnp.exp(jnp.minimum(ld, 20.0))))


if __name__ == "__main__":
    # Small shapes consistent with the module's forward:
    #   TDecoder(num_h_layers=3, z_dim=8, h_dim=32, x_dim=16), batch=8
    num_h_layers, z_dim, h_dim, x_dim = 3, 8, 32, 16
    batch = 8

    key = jax.random.PRNGKey(0)
    key, kz = jax.random.split(key)
    z = jax.random.normal(kz, (batch, z_dim), jnp.float32)

    hidden_params, out_w, out_b = init_tdecoder_params(
        key, num_h_layers, z_dim, h_dim, x_dim
    )

    out = tdecoder_forward(z, hidden_params, out_w, out_b)
    out = jax.block_until_ready(out)

    ref = tdecoder_reference(z, hidden_params, out_w, out_b)
    assert out.shape == (batch, x_dim)
    # Slightly looser tolerance: one-pass LN statistics vs. two-pass reference.
    assert jnp.allclose(out, ref, atol=1e-4, rtol=1e-4), (
        f"max abs err = {jnp.max(jnp.abs(out - ref))}"
    )

    print("KERNEL_OK")
</pallas_src>

<mosaic_0001>
module attributes {stable_mosaic.version = 11 : i64} {
  func.func @kernel(%arg0: i32, %arg1: memref<8x8xf32, #tpu.memory_space<vmem>>, %arg2: memref<8x32xf32, #tpu.memory_space<vmem>>, %arg3: memref<32x32xf32, #tpu.memory_space<vmem>>, %arg4: memref<32x32xf32, #tpu.memory_space<vmem>>, %arg5: memref<3x32xf32, #tpu.memory_space<vmem>>, %arg6: memref<32x128xf32, #tpu.memory_space<vmem>>, %arg7: memref<1x128xf32, #tpu.memory_space<vmem>>, %arg8: memref<8x128xf32, #tpu.memory_space<vmem>>) attributes {dimension_semantics = [#tpu.dimension_semantics<parallel>], iteration_bounds = array<i64: 1>, scalar_prefetch = 0 : i64, scratch_operands = 0 : i64, tpu.core_type = #tpu.core_type<tc>, window_params = [{transform_indices = @transform_0, window_bounds = array<i64: 8, 8>}, {pipeline_mode = #tpu.pipeline_mode<synchronous>, transform_indices = @transform_1, window_bounds = array<i64: 8, 32>}, {pipeline_mode = #tpu.pipeline_mode<synchronous>, transform_indices = @transform_2, window_bounds = array<i64: 32, 32>}, {pipeline_mode = #tpu.pipeline_mode<synchronous>, transform_indices = @transform_3, window_bounds = array<i64: 32, 32>}, {pipeline_mode = #tpu.pipeline_mode<synchronous>, transform_indices = @transform_4, window_bounds = array<i64: 3, 32>}, {pipeline_mode = #tpu.pipeline_mode<synchronous>, transform_indices = @transform_5, window_bounds = array<i64: 32, 128>}, {pipeline_mode = #tpu.pipeline_mode<synchronous>, transform_indices = @transform_6, window_bounds = array<i64: 1, 128>}, {transform_indices = @transform_7, window_bounds = array<i64: 8, 128>}]} {
    %c0 = arith.constant 0 : index
    %c0_0 = arith.constant 0 : index
    %0 = vector.load %arg1[%c0, %c0_0] : memref<8x8xf32, #tpu.memory_space<vmem>>, vector<8x8xf32>
    %c0_1 = arith.constant 0 : index
    %c0_2 = arith.constant 0 : index
    %1 = vector.load %arg2[%c0_1, %c0_2] : memref<8x32xf32, #tpu.memory_space<vmem>>, vector<8x32xf32>
    %c0_3 = arith.constant 0 : index
    %c0_4 = arith.constant 0 : index
    %2 = vector.load %arg5[%c0_3, %c0_4] : memref<3x32xf32, #tpu.memory_space<vmem>>, vector<1x32xf32>
    %cst = arith.constant dense<0.000000e+00> : vector<8x32xf32>
    %3 = tpu.matmul %0, %1, %cst {dimension_numbers = #tpu.dot_dimension_numbers<[1], [0], [0], [1], [0, 0, 1, 1], [], []>} : vector<8x8xf32>, vector<8x32xf32>, vector<8x32xf32> -> vector<8x32xf32>
    %4 = vector.broadcast %2 : vector<1x32xf32> to vector<8x32xf32>
    %5 = arith.addf %3, %4 : vector<8x32xf32>
    %cst_5 = arith.constant dense<0.000000e+00> : vector<8xf32>
    %6 = vector.multi_reduction <add>, %5, %cst_5 [1] : vector<8x32xf32> to vector<8xf32>
    %7 = vector.shape_cast %6 : vector<8xf32> to vector<8x1xf32>
    %8 = arith.mulf %5, %5 : vector<8x32xf32>
    %cst_6 = arith.constant dense<0.000000e+00> : vector<8xf32>
    %9 = vector.multi_reduction <add>, %8, %cst_6 [1] : vector<8x32xf32> to vector<8xf32>
    %10 = vector.shape_cast %9 : vector<8xf32> to vector<8x1xf32>
    %cst_7 = arith.constant 3.125000e-02 : f32
    %11 = vector.broadcast %cst_7 : f32 to vector<8x1xf32>
    %12 = arith.mulf %7, %11 : vector<8x1xf32>
    %cst_8 = arith.constant 3.125000e-02 : f32
    %13 = vector.broadcast %cst_8 : f32 to vector<8x1xf32>
    %14 = arith.mulf %10, %13 : vector<8x1xf32>
    %15 = arith.mulf %12, %12 : vector<8x1xf32>
    %16 = arith.subf %14, %15 : vector<8x1xf32>
    %cst_9 = arith.constant 0.000000e+00 : f32
    %17 = vector.broadcast %cst_9 : f32 to vector<8x1xf32>
    %18 = arith.maximumf %16, %17 : vector<8x1xf32>
    %19 = vector.broadcast %12 : vector<8x1xf32> to vector<8x32xf32>
    %20 = arith.subf %5, %19 : vector<8x32xf32>
    %cst_10 = arith.constant 9.99999974E-6 : f32
    %21 = vector.broadcast %cst_10 : f32 to vector<8x1xf32>
    %22 = arith.addf %18, %21 : vector<8x1xf32>
    %23 = math.rsqrt %22 : vector<8x1xf32>
    %24 = vector.broadcast %23 : vector<8x1xf32> to vector<8x32xf32>
    %25 = arith.mulf %20, %24 : vector<8x32xf32>
    %cst_11 = arith.constant 0.000000e+00 : f32
    %26 = vector.broadcast %cst_11 : f32 to vector<8x32xf32>
    %27 = arith.maximumf %25, %26 : vector<8x32xf32>
    %c0_12 = arith.constant 0 : index
    %c0_13 = arith.constant 0 : index
    %28 = vector.load %arg3[%c0_12, %c0_13] : memref<32x32xf32, #tpu.memory_space<vmem>>, vector<32x32xf32>
    %c1 = arith.constant 1 : index
    %c0_14 = arith.constant 0 : index
    %29 = vector.load %arg5[%c1, %c0_14] : memref<3x32xf32, #tpu.memory_space<vmem>>, vector<1x32xf32>
    %cst_15 = arith.constant dense<0.000000e+00> : vector<8x32xf32>
    %30 = tpu.matmul %27, %28, %cst_15 {dimension_numbers = #tpu.dot_dimension_numbers<[1], [0], [0], [1], [0, 0, 1, 1], [], []>} : vector<8x32xf32>, vector<32x32xf32>, vector<8x32xf32> -> vector<8x32xf32>
    %31 = vector.broadcast %29 : vector<1x32xf32> to vector<8x32xf32>
    %32 = arith.addf %30, %31 : vector<8x32xf32>
    %cst_16 = arith.constant dense<0.000000e+00> : vector<8xf32>
    %33 = vector.multi_reduction <add>, %32, %cst_16 [1] : vector<8x32xf32> to vector<8xf32>
    %34 = vector.shape_cast %33 : vector<8xf32> to vector<8x1xf32>
    %35 = arith.mulf %32, %32 : vector<8x32xf32>
    %cst_17 = arith.constant dense<0.000000e+00> : vector<8xf32>
    %36 = vector.multi_reduction <add>, %35, %cst_17 [1] : vector<8x32xf32> to vector<8xf32>
    %37 = vector.shape_cast %36 : vector<8xf32> to vector<8x1xf32>
    %cst_18 = arith.constant 3.125000e-02 : f32
    %38 = vector.broadcast %cst_18 : f32 to vector<8x1xf32>
    %39 = arith.mulf %34, %38 : vector<8x1xf32>
    %cst_19 = arith.constant 3.125000e-02 : f32
    %40 = vector.broadcast %cst_19 : f32 to vector<8x1xf32>
    %41 = arith.mulf %37, %40 : vector<8x1xf32>
    %42 = arith.mulf %39, %39 : vector<8x1xf32>
    %43 = arith.subf %41, %42 : vector<8x1xf32>
    %cst_20 = arith.constant 0.000000e+00 : f32
    %44 = vector.broadcast %cst_20 : f32 to vector<8x1xf32>
    %45 = arith.maximumf %43, %44 : vector<8x1xf32>
    %46 = vector.broadcast %39 : vector<8x1xf32> to vector<8x32xf32>
    %47 = arith.subf %32, %46 : vector<8x32xf32>
    %cst_21 = arith.constant 9.99999974E-6 : f32
    %48 = vector.broadcast %cst_21 : f32 to vector<8x1xf32>
    %49 = arith.addf %45, %48 : vector<8x1xf32>
    %50 = math.rsqrt %49 : vector<8x1xf32>
    %51 = vector.broadcast %50 : vector<8x1xf32> to vector<8x32xf32>
    %52 = arith.mulf %47, %51 : vector<8x32xf32>
    %cst_22 = arith.constant 0.000000e+00 : f32
    %53 = vector.broadcast %cst_22 : f32 to vector<8x32xf32>
    %54 = arith.maximumf %52, %53 : vector<8x32xf32>
    %c0_23 = arith.constant 0 : index
    %c0_24 = arith.constant 0 : index
    %55 = vector.load %arg4[%c0_23, %c0_24] : memref<32x32xf32, #tpu.memory_space<vmem>>, vector<32x32xf32>
    %c2 = arith.constant 2 : index
    %c0_25 = arith.constant 0 : index
    %56 = vector.load %arg5[%c2, %c0_25] : memref<3x32xf32, #tpu.memory_space<vmem>>, vector<1x32xf32>
    %cst_26 = arith.constant dense<0.000000e+00> : vector<8x32xf32>
    %57 = tpu.matmul %54, %55, %cst_26 {dimension_numbers = #tpu.dot_dimension_numbers<[1], [0], [0], [1], [0, 0, 1, 1], [], []>} : vector<8x32xf32>, vector<32x32xf32>, vector<8x32xf32> -> vector<8x32xf32>
    %58 = vector.broadcast %56 : vector<1x32xf32> to vector<8x32xf32>
    %59 = arith.addf %57, %58 : vector<8x32xf32>
    %cst_27 = arith.constant dense<0.000000e+00> : vector<8xf32>
    %60 = vector.multi_reduction <add>, %59, %cst_27 [1] : vector<8x32xf32> to vector<8xf32>
    %61 = vector.shape_cast %60 : vector<8xf32> to vector<8x1xf32>
    %62 = arith.mulf %59, %59 : vector<8x32xf32>
    %cst_28 = arith.constant dense<0.000000e+00> : vector<8xf32>
    %63 = vector.multi_reduction <add>, %62, %cst_28 [1] : vector<8x32xf32> to vector<8xf32>
    %64 = vector.shape_cast %63 : vector<8xf32> to vector<8x1xf32>
    %cst_29 = arith.constant 3.125000e-02 : f32
    %65 = vector.broadcast %cst_29 : f32 to vector<8x1xf32>
    %66 = arith.mulf %61, %65 : vector<8x1xf32>
    %cst_30 = arith.constant 3.125000e-02 : f32
    %67 = vector.broadcast %cst_30 : f32 to vector<8x1xf32>
    %68 = arith.mulf %64, %67 : vector<8x1xf32>
    %69 = arith.mulf %66, %66 : vector<8x1xf32>
    %70 = arith.subf %68, %69 : vector<8x1xf32>
    %cst_31 = arith.constant 0.000000e+00 : f32
    %71 = vector.broadcast %cst_31 : f32 to vector<8x1xf32>
    %72 = arith.maximumf %70, %71 : vector<8x1xf32>
    %73 = vector.broadcast %66 : vector<8x1xf32> to vector<8x32xf32>
    %74 = arith.subf %59, %73 : vector<8x32xf32>
    %cst_32 = arith.constant 9.99999974E-6 : f32
    %75 = vector.broadcast %cst_32 : f32 to vector<8x1xf32>
    %76 = arith.addf %72, %75 : vector<8x1xf32>
    %77 = math.rsqrt %76 : vector<8x1xf32>
    %78 = vector.broadcast %77 : vector<8x1xf32> to vector<8x32xf32>
    %79 = arith.mulf %74, %78 : vector<8x32xf32>
    %cst_33 = arith.constant 0.000000e+00 : f32
    %80 = vector.broadcast %cst_33 : f32 to vector<8x32xf32>
    %81 = arith.maximumf %79, %80 : vector<8x32xf32>
    %c0_34 = arith.constant 0 : index
    %c0_35 = arith.constant 0 : index
    %82 = vector.load %arg6[%c0_34, %c0_35] : memref<32x128xf32, #tpu.memory_space<vmem>>, vector<32x128xf32>
    %cst_36 = arith.constant dense<0.000000e+00> : vector<8x128xf32>
    %83 = tpu.matmul %81, %82, %cst_36 {dimension_numbers = #tpu.dot_dimension_numbers<[1], [0], [0], [1], [0, 0, 1, 1], [], []>} : vector<8x32xf32>, vector<32x128xf32>, vector<8x128xf32> -> vector<8x128xf32>
    %c0_37 = arith.constant 0 : index
    %c0_38 = arith.constant 0 : index
    %84 = vector.load %arg7[%c0_37, %c0_38] : memref<1x128xf32, #tpu.memory_space<vmem>>, vector<1x128xf32>
    %85 = vector.broadcast %84 : vector<1x128xf32> to vector<8x128xf32>
    %86 = arith.addf %83, %85 : vector<8x128xf32>
    %cst_39 = arith.constant 2.000000e+01 : f32
    %87 = vector.broadcast %cst_39 : f32 to vector<8x128xf32>
    %88 = arith.minimumf %86, %87 : vector<8x128xf32>
    %89 = math.exp %88 : vector<8x128xf32>
    %90 = math.log1p %89 : vector<8x128xf32>
    %cst_40 = arith.constant 2.000000e+01 : f32
    %91 = vector.broadcast %cst_40 : f32 to vector<8x128xf32>
    %92 = arith.cmpf ogt, %86, %91 : vector<8x128xf32>
    %93 = arith.select %92, %86, %90 : vector<8x128xi1>, vector<8x128xf32>
    %c0_41 = arith.constant 0 : index
    %c0_42 = arith.constant 0 : index
    %94 = vector.load %arg8[%c0_41, %c0_42] : memref<8x128xf32, #tpu.memory_space<vmem>>, vector<8x128xf32>
    tpu.vector_store %arg8[%c0_41, %c0_42], %93 {strides = array<i32>} : memref<8x128xf32, #tpu.memory_space<vmem>>, vector<8x128xf32>,
    return
  }
  func.func @transform_0(%arg0: i32) -> (i32, i32) {
    %c0_i32 = arith.constant 0 : i32
    %c0_i32_0 = arith.constant 0 : i32
    return %arg0, %c0_i32 : i32, i32
  }
  func.func @transform_1(%arg0: i32) -> (i32, i32) {
    %c0_i32 = arith.constant 0 : i32
    %c0_i32_0 = arith.constant 0 : i32
    %c0_i32_1 = arith.constant 0 : i32
    return %c0_i32, %c0_i32_0 : i32, i32
  }
  func.func @transform_2(%arg0: i32) -> (i32, i32) {
    %c0_i32 = arith.constant 0 : i32
    %c0_i32_0 = arith.constant 0 : i32
    %c0_i32_1 = arith.constant 0 : i32
    return %c0_i32, %c0_i32_0 : i32, i32
  }
  func.func @transform_3(%arg0: i32) -> (i32, i32) {
    %c0_i32 = arith.constant 0 : i32
    %c0_i32_0 = arith.constant 0 : i32
    %c0_i32_1 = arith.constant 0 : i32
    return %c0_i32, %c0_i32_0 : i32, i32
  }
  func.func @transform_4(%arg0: i32) -> (i32, i32) {
    %c0_i32 = arith.constant 0 : i32
    %c0_i32_0 = arith.constant 0 : i32
    %c0_i32_1 = arith.constant 0 : i32
    return %c0_i32, %c0_i32_0 : i32, i32
  }
  func.func @transform_5(%arg0: i32) -> (i32, i32) {
    %c0_i32 = arith.constant 0 : i32
    %c0_i32_0 = arith.constant 0 : i32
    %c0_i32_1 = arith.constant 0 : i32
    return %c0_i32, %c0_i32_0 : i32, i32
  }
  func.func @transform_6(%arg0: i32) -> (i32, i32) {
    %c0_i32 = arith.constant 0 : i32
    %c0_i32_0 = arith.constant 0 : i32
    %c0_i32_1 = arith.constant 0 : i32
    return %c0_i32, %c0_i32_0 : i32, i32
  }
  func.func @transform_7(%arg0: i32) -> (i32, i32) {
    %c0_i32 = arith.constant 0 : i32
    %c0_i32_0 = arith.constant 0 : i32
    return %arg0, %c0_i32 : i32, i32
  }
}

</mosaic_0001>

<llo_original>
// kernel: tpu_custom_call.1
$region0: #{tpu_custom_call.1}
  #allocation0 [shape = 'u32[]', space=smem, size = 0x4, offset = 0x4, fixed_abs, tag = 'smem constant byte address 0x4 - core index']
  #allocation1 [shape = 'u32[144,128]{1,0:T(1,128)}', space=vmem, size = 0x12000, scoped, tag = 'internal scratch']
  %s0 = inlined_call_operand.hbm [shape: f32[8,8], index: 0, kind: input, shape index: {}]
  %s1 = inlined_call_operand.hbm [shape: f32[8,32], index: 1, kind: input, shape index: {}]
  %s2 = inlined_call_operand.hbm [shape: f32[32,32], index: 2, kind: input, shape index: {}]
  %s3 = inlined_call_operand.hbm [shape: f32[32,32], index: 3, kind: input, shape index: {}]
  %s4 = inlined_call_operand.vmem [shape: f32[3,32], index: 4, kind: input, shape index: {}]
  %s5 = inlined_call_operand.hbm [shape: f32[32,128], index: 5, kind: input, shape index: {}]
  %s6 = inlined_call_operand.vmem [shape: f32[1,128], index: 6, kind: input, shape index: {}]
  %s7 = inlined_call_operand.hbm [shape: f32[8,128], index: 7, kind: output, shape index: {}]
  %s8 = sld [smem:[#allocation0]]
  $region58: #{tpu_custom_call.1} parent=0
    _
  %s10 = ssub.s32 1, %s8
  %s11 = scalar_select 0, %s10, %s8
  $region1: #{tpu_custom_call.1} parent=0
    #allocation2 [shape = 'u8[4096]{0}', space=vmem, size = 0x1000, scoped, tag = 'input window, operand 0, single buffered']
    #allocation3 [shape = 's32[1]{0}', space=sflag, size = 0x4, scoped, tag = 'scoped memory for tpu_custom_call.1']
    #allocation4 [shape = 's32[1]{0}', space=sflag, size = 0x4, scoped, tag = 'scoped memory for tpu_custom_call.1']
    #allocation5 [shape = 'u8[4096]{0}', space=vmem, size = 0x1000, scoped, tag = 'input window, operand 1, single buffered']
    #allocation6 [shape = 's32[1]{0}', space=sflag, size = 0x4, scoped, tag = 'scoped memory for tpu_custom_call.1']
    #allocation7 [shape = 'u8[16384]{0}', space=vmem, size = 0x4000, scoped, tag = 'input window, operand 2, single buffered']
    #allocation8 [shape = 'u8[16384]{0}', space=vmem, size = 0x4000, scoped, tag = 'input window, operand 3, single buffered']
    #allocation9 [shape = 's32[1]{0}', space=sflag, size = 0x4, scoped, tag = 'scoped memory for tpu_custom_call.1']
    #allocation10 [shape = 'u8[16384]{0}', space=vmem, size = 0x4000, scoped, tag = 'input window, operand 5, single buffered']
    #allocation11 [shape = 'u8[4096]{0}', space=vmem, size = 0x1000, scoped, tag = 'output window, operand 0, single buffered']
    %12 = vsyncpa [#allocation3], 0
    %13 = vsyncpa [#allocation6], 0
    %14 = vsyncpa [#allocation9], 0
    %15 = vsyncpa [#allocation4], 0
    // Predicated region
    $region2: #{tpu_custom_call.1} parent=1 // pred_check
      _
    $region3: #{tpu_custom_call.1} parent=1 // pred_check_branch
      %17 = sbr.rel (0) target = $region5
    $region4: #{tpu_custom_call.1} parent=1 // pred_region
      %s19 = ssub.s32 128, 128
      %20 = vsyncadd [#allocation3], %s19
      %s22 = sshll.u32 [#allocation2], 4
      %s23 = int_to_ptr.vmem [resolvable:$true] %s22
      %25 = dma.hbm_to_vmem [thread:$0]  %s0, 128, %s23, [#allocation3]
    $region5: #{tpu_custom_call.1} parent=1 // pred_fallthru
      _
    // Predicated region
    $region6: #{tpu_custom_call.1} parent=1 // pred_check
      _
    $region7: #{tpu_custom_call.1} parent=1 // pred_check_branch
      %27 = sbr.rel (0) target = $region9
    $region8: #{tpu_custom_call.1} parent=1 // pred_region
      %s29 = ssub.s32 128, 128
      %30 = vsyncadd [#allocation6], %s29
      %s32 = sshll.u32 [#allocation5], 4
      %s33 = int_to_ptr.vmem [resolvable:$true] %s32
      %35 = dma.hbm_to_vmem [thread:$0]  %s1, 128, %s33, [#allocation6]
    $region9: #{tpu_custom_call.1} parent=1 // pred_fallthru
      _
    // Predicated region
    $region10: #{tpu_custom_call.1} parent=1 // pred_check
      _
    $region11: #{tpu_custom_call.1} parent=1 // pred_check_branch
      %37 = sbr.rel (0) target = $region13
    $region12: #{tpu_custom_call.1} parent=1 // pred_region
      %s39 = ssub.s32 512, 512
      %40 = vsyncadd [#allocation6], %s39
      %s41 = sshll.u32 [#allocation7], 4
      %s42 = int_to_ptr.vmem [resolvable:$true] %s41
      %47 = dma.hbm_to_vmem [thread:$0]  %s2, 512, %s42, [#allocation6], 128, 128, 8
    $region13: #{tpu_custom_call.1} parent=1 // pred_fallthru
      _
    // Predicated region
    $region14: #{tpu_custom_call.1} parent=1 // pred_check
      _
    $region15: #{tpu_custom_call.1} parent=1 // pred_check_branch
      %49 = sbr.rel (0) target = $region17
    $region16: #{tpu_custom_call.1} parent=1 // pred_region
      %s51 = ssub.s32 512, 512
      %52 = vsyncadd [#allocation9], %s51
      %s53 = sshll.u32 [#allocation8], 4
      %s54 = int_to_ptr.vmem [resolvable:$true] %s53
      %59 = dma.hbm_to_vmem [thread:$0]  %s3, 512, %s54, [#allocation9], 128, 128, 8
    $region17: #{tpu_custom_call.1} parent=1 // pred_fallthru
      _
    // Predicated region
    $region18: #{tpu_custom_call.1} parent=1 // pred_check
      _
    $region19: #{tpu_custom_call.1} parent=1 // pred_check_branch
      %61 = sbr.rel (0) target = $region21
    $region20: #{tpu_custom_call.1} parent=1 // pred_region
      _
    $region21: #{tpu_custom_call.1} parent=1 // pred_fallthru
      _
    // Predicated region
    $region22: #{tpu_custom_call.1} parent=1 // pred_check
      _
    $region23: #{tpu_custom_call.1} parent=1 // pred_check_branch
      %63 = sbr.rel (0) target = $region25
    $region24: #{tpu_custom_call.1} parent=1 // pred_region
      %s65 = ssub.s32 512, 512
      %66 = vsyncadd [#allocation9], %s65
      %s67 = sshll.u32 [#allocation10], 4
      %s68 = int_to_ptr.vmem [resolvable:$true] %s67
      %73 = dma.hbm_to_vmem [thread:$0]  %s5, 512, %s68, [#allocation9], 128, 128, 8
    $region25: #{tpu_custom_call.1} parent=1 // pred_fallthru
      _
    // Predicated region
    $region26: #{tpu_custom_call.1} parent=1 // pred_check
      _
    $region27: #{tpu_custom_call.1} parent=1 // pred_check_branch
      %75 = sbr.rel (0) target = $region29
    $region28: #{tpu_custom_call.1} parent=1 // pred_region
      _
    $region29: #{tpu_custom_call.1} parent=1 // pred_fallthru
      _
    // Predicated region
    $region30: #{tpu_custom_call.1} parent=1 // pred_check
      _
    $region31: #{tpu_custom_call.1} parent=1 // pred_check_branch
      %77 = sbr.rel (0) target = $region33
    $region32: #{tpu_custom_call.1} parent=1 // pred_region
      %78 = dma.done [#allocation3], 128
    $region33: #{tpu_custom_call.1} parent=1 // pred_fallthru
      _
    // Predicated region
    $region34: #{tpu_custom_call.1} parent=1 // pred_check
      _
    $region35: #{tpu_custom_call.1} parent=1 // pred_check_branch
      %80 = sbr.rel (0) target = $region37
    $region36: #{tpu_custom_call.1} parent=1 // pred_region
      %81 = dma.done [#allocation6], 128
    $region37: #{tpu_custom_call.1} parent=1 // pred_fallthru
      _
    // Predicated region
    $region38: #{tpu_custom_call.1} parent=1 // pred_check
      _
    $region39: #{tpu_custom_call.1} parent=1 // pred_check_branch
      %83 = sbr.rel (0) target = $region41
    $region40: #{tpu_custom_call.1} parent=1 // pred_region
      %84 = dma.done [#allocation6], 512
    $region41: #{tpu_custom_call.1} parent=1 // pred_fallthru
      _
    // Predicated region
    $region42: #{tpu_custom_call.1} parent=1 // pred_check
      _
    $region43: #{tpu_custom_call.1} parent=1 // pred_check_branch
      %86 = sbr.rel (0) target = $region45
    $region44: #{tpu_custom_call.1} parent=1 // pred_region
      %87 = dma.done [#allocation9], 512
    $region45: #{tpu_custom_call.1} parent=1 // pred_fallthru
      _
    // Predicated region
    $region46: #{tpu_custom_call.1} parent=1 // pred_check
      _
    $region47: #{tpu_custom_call.1} parent=1 // pred_check_branch
      %89 = sbr.rel (0) target = $region49
    $region48: #{tpu_custom_call.1} parent=1 // pred_region
      %90 = dma.done [#allocation9], 512
    $region49: #{tpu_custom_call.1} parent=1 // pred_fallthru
      _
    %v91 = vld [vmem:[#allocation2] sm:$0xff]
    %v92 = vld [vmem:[#allocation5] sm:$0xff]
    %v93 = vld [vmem:[%s4] sm:$0x1]
    %v94 = vlaneseq
    %v95 = vshrl.u32 %v94, 7
    %v96 = vsub.s32 0, %v95
    %v97 = vrot.slane %v93, %v96
    %vm98 = vcmask 64512
    %v100 = vsel %vm98, %v91, 0
    %102 = vmatprep.subr.mxu0 0.0
    %103 = vmatpush1.msra.mxu0 %v92
    %104 = vmatprep.subr.mxu0 0.0
    %105 = vmatpush1.msra.mxu0 0.0
    %106 = vmatprep.subr.mxu0 0.0
    %107 = vmatpush1.msra.mxu0 0.0
    %108 = vmatprep.subr.mxu0 0.0
    %109 = vmatpush1.msra.mxu0 0.0
    %110 = vmatprep.subr.mxu0 0.0
    %111 = vmatpush1.msra.mxu0 0.0
    %112 = vmatprep.subr.mxu0 0.0
    %113 = vmatpush1.msra.mxu0 0.0
    %114 = vmatprep.subr.mxu0 0.0
    %115 = vmatpush1.msra.mxu0 0.0
    %116 = vmatprep.subr.mxu0 0.0
    %117 = vmatpush1.msra.mxu0 0.0
    %118 = vmatprep.subr.mxu0 0.0
    %119 = vmatpush1.msra.mxu0 0.0
    %120 = vmatprep.subr.mxu0 0.0
    %121 = vmatpush1.msra.mxu0 0.0
    %122 = vmatprep.subr.mxu0 0.0
    %123 = vmatpush1.msra.mxu0 0.0
    %124 = vmatprep.subr.mxu0 0.0
    %125 = vmatpush1.msra.mxu0 0.0
    %126 = vmatprep.subr.mxu0 0.0
    %127 = vmatpush1.msra.mxu0 0.0
    %128 = vmatprep.subr.mxu0 0.0
    %129 = vmatpush1.msra.mxu0 0.0
    %130 = vmatprep.subr.mxu0 0.0
    %131 = vmatpush1.msra.mxu0 0.0
    %132 = vmatprep.subr.mxu0 0.0
    %133 = vmatpush1.msra.mxu0 0.0
    %134 = vmatprep.subr.mxu0 0.0
    %135 = vmatpush1.msra.mxu0 0.0
    %136 = vmatprep.subr.mxu0 0.0
    %137 = vmatpush1.msra.mxu0 0.0
    %138 = vmatprep.subr.mxu0 0.0
    %139 = vmatpush1.msra.mxu0 0.0
    %140 = vmatprep.subr.mxu0 0.0
    %141 = vmatpush1.msra.mxu0 0.0
    %142 = vmatprep.subr.mxu0 0.0
    %143 = vmatpush1.msra.mxu0 0.0
    %144 = vmatprep.subr.mxu0 0.0
    %145 = vmatpush1.msra.mxu0 0.0
    %146 = vmatprep.subr.mxu0 0.0
    %147 = vmatpush1.msra.mxu0 0.0
    %148 = vmatprep.subr.mxu0 0.0
    %149 = vmatpush1.msra.mxu0 0.0
    %150 = vmatprep.subr.mxu0 0.0
    %151 = vmatpush1.msra.mxu0 0.0
    %152 = vmatprep.subr.mxu0 0.0
    %153 = vmatpush1.msra.mxu0 0.0
    %154 = vmatprep.subr.mxu0 0.0
    %155 = vmatpush1.msra.mxu0 0.0
    %156 = vmatprep.subr.mxu0 0.0
    %157 = vmatpush1.msra.mxu0 0.0
    %158 = vmatprep.subr.mxu0 0.0
    %159 = vmatpush1.msra.mxu0 0.0
    %160 = vmatprep.subr.mxu0 0.0
    %161 = vmatpush1.msra.mxu0 0.0
    %162 = vmatprep.subr.mxu0 0.0
    %163 = vmatpush1.msra.mxu0 0.0
    %164 = vmatprep.subr.mxu0 0.0
    %165 = vmatpush1.msra.mxu0 0.0
    %166 = vmatprep.mubr.f32.mxu0 0.0
    %167 = vmatmul.mubr.f32.gmra.mrb[0].mxu0 %v100
    %v168 = vpop.f32.mrb[0].mxu0
    %v169 = vadd.f32 %v97, %v168
    %v170 = vpop.f32.mrb[0].mxu0
    %171 = vdwg.mxu0
    %vm172 = vcmask 261120
    %v173 = vsel %vm172, %v169, 0.0
    %174 = vadd.xlane.f32.xlu0 %v173
    %v175 = vpop.xlane.xlu0 %174
    %v176 = vmul.f32 %v169, %v169
    %v177 = vsel %vm172, %v176, 0.0
    %178 = vadd.xlane.f32.xlu0 %v177
    %v179 = vpop.xlane.xlu0 %178
    %v180 = vmul.f32 %v175, 0.03125
    %v181 = vmul.f32 %v179, 0.03125
    %v182 = vmul.f32 %v180, %v180
    %v183 = vsub.f32 %v181, %v182
    %v184 = vmax.f32 %v183, 0.0
    %v185 = vsub.f32 %v169, %v180
    %v186 = vadd.f32 %v184, 1e-05
    %v187 = vrsqrt.pop %v186
    %v188 = vmul.f32 %v185, %v187
    %v189 = vmax.f32 %v188, 0.0
    %v190 = vld [vmem:[#allocation7] sm:$0xff]
    %v191 = vld [vmem:[#allocation7 + $0x8] sm:$0xff]
    %v192 = vld [vmem:[#allocation7 + $0x10] sm:$0xff]
    %v193 = vld [vmem:[#allocation7 + $0x18] sm:$0xff]
    %v194 = vld [vmem:[%s4 + $0x1] sm:$0x1]
    %v195 = vlaneseq
    %v196 = vshrl.u32 %v195, 7
    %v197 = vsub.s32 0, %v196
    %v198 = vrot.slane %v194, %v197
    %v200 = vsel %vm172, %v189, 0
    %202 = vmatprep.subr.mxu0 0.0
    %203 = vmatpush1.msra.mxu0 %v190
    %204 = vmatprep.subr.mxu0 0.0
    %205 = vmatpush1.msra.mxu0 %v191
    %206 = vmatprep.subr.mxu0 0.0
    %207 = vmatpush1.msra.mxu0 %v192
    %208 = vmatprep.subr.mxu0 0.0
    %209 = vmatpush1.msra.mxu0 %v193
    %210 = vmatprep.subr.mxu0 0.0
    %211 = vmatpush1.msra.mxu0 0.0
    %212 = vmatprep.subr.mxu0 0.0
    %213 = vmatpush1.msra.mxu0 0.0
    %214 = vmatprep.subr.mxu0 0.0
    %215 = vmatpush1.msra.mxu0 0.0
    %216 = vmatprep.subr.mxu0 0.0
    %217 = vmatpush1.msra.mxu0 0.0
    %218 = vmatprep.subr.mxu0 0.0
    %219 = vmatpush1.msra.mxu0 0.0
    %220 = vmatprep.subr.mxu0 0.0
    %221 = vmatpush1.msra.mxu0 0.0
    %222 = vmatprep.subr.mxu0 0.0
    %223 = vmatpush1.msra.mxu0 0.0
    %224 = vmatprep.subr.mxu0 0.0
    %225 = vmatpush1.msra.mxu0 0.0
    %226 = vmatprep.subr.mxu0 0.0
    %227 = vmatpush1.msra.mxu0 0.0
    %228 = vmatprep.subr.mxu0 0.0
    %229 = vmatpush1.msra.mxu0 0.0
    %230 = vmatprep.subr.mxu0 0.0
    %231 = vmatpush1.msra.mxu0 0.0
    %232 = vmatprep.subr.mxu0 0.0
    %233 = vmatpush1.msra.mxu0 0.0
    %234 = vmatprep.subr.mxu0 0.0
    %235 = vmatpush1.msra.mxu0 0.0
    %236 = vmatprep.subr.mxu0 0.0
    %237 = vmatpush1.msra.mxu0 0.0
    %238 = vmatprep.subr.mxu0 0.0
    %239 = vmatpush1.msra.mxu0 0.0
    %240 = vmatprep.subr.mxu0 0.0
    %241 = vmatpush1.msra.mxu0 0.0
    %242 = vmatprep.subr.mxu0 0.0
    %243 = vmatpush1.msra.mxu0 0.0
    %244 = vmatprep.subr.mxu0 0.0
    %245 = vmatpush1.msra.mxu0 0.0
    %246 = vmatprep.subr.mxu0 0.0
    %247 = vmatpush1.msra.mxu0 0.0
    %248 = vmatprep.subr.mxu0 0.0
    %249 = vmatpush1.msra.mxu0 0.0
    %250 = vmatprep.subr.mxu0 0.0
    %251 = vmatpush1.msra.mxu0 0.0
    %252 = vmatprep.subr.mxu0 0.0
    %253 = vmatpush1.msra.mxu0 0.0
    %254 = vmatprep.subr.mxu0 0.0
    %255 = vmatpush1.msra.mxu0 0.0
    %256 = vmatprep.subr.mxu0 0.0
    %257 = vmatpush1.msra.mxu0 0.0
    %258 = vmatprep.subr.mxu0 0.0
    %259 = vmatpush1.msra.mxu0 0.0
    %260 = vmatprep.subr.mxu0 0.0
    %261 = vmatpush1.msra.mxu0 0.0
    %262 = vmatprep.subr.mxu0 0.0
    %263 = vmatpush1.msra.mxu0 0.0
    %264 = vmatprep.subr.mxu0 0.0
    %265 = vmatpush1.msra.mxu0 0.0
    %266 = vmatprep.mubr.f32.mxu0 0.0
    %267 = vmatmul.mubr.f32.gmra.mrb[0].mxu0 %v200
    %v268 = vpop.f32.mrb[0].mxu0
    %v269 = vadd.f32 %v198, %v268
    %v270 = vpop.f32.mrb[0].mxu0
    %271 = vdwg.mxu0
    %v272 = vsel %vm172, %v269, 0.0
    %273 = vadd.xlane.f32.xlu0 %v272
    %v274 = vpop.xlane.xlu0 %273
    %v275 = vmul.f32 %v269, %v269
    %v276 = vsel %vm172, %v275, 0.0
    %277 = vadd.xlane.f32.xlu0 %v276
    %v278 = vpop.xlane.xlu0 %277
    %v279 = vmul.f32 %v274, 0.03125
    %v280 = vmul.f32 %v278, 0.03125
    %v281 = vmul.f32 %v279, %v279
    %v282 = vsub.f32 %v280, %v281
    %v283 = vmax.f32 %v282, 0.0
    %v284 = vsub.f32 %v269, %v279
    %v285 = vadd.f32 %v283, 1e-05
    %v286 = vrsqrt.pop %v285
    %v287 = vmul.f32 %v284, %v286
    %v288 = vmax.f32 %v287, 0.0
    %v289 = vld [vmem:[#allocation8] sm:$0xff]
    %v290 = vld [vmem:[#allocation8 + $0x8] sm:$0xff]
    %v291 = vld [vmem:[#allocation8 + $0x10] sm:$0xff]
    %v292 = vld [vmem:[#allocation8 + $0x18] sm:$0xff]
    %v293 = vld [vmem:[%s4 + $0x2] sm:$0x1]
    %v294 = vlaneseq
    %v295 = vshrl.u32 %v294, 7
    %v296 = vsub.s32 0, %v295
    %v297 = vrot.slane %v293, %v296
    %v299 = vsel %vm172, %v288, 0
    %301 = vmatprep.subr.mxu0 0.0
    %302 = vmatpush1.msra.mxu0 %v289
    %303 = vmatprep.subr.mxu0 0.0
    %304 = vmatpush1.msra.mxu0 %v290
    %305 = vmatprep.subr.mxu0 0.0
    %306 = vmatpush1.msra.mxu0 %v291
    %307 = vmatprep.subr.mxu0 0.0
    %308 = vmatpush1.msra.mxu0 %v292
    %309 = vmatprep.subr.mxu0 0.0
    %310 = vmatpush1.msra.mxu0 0.0
    %311 = vmatprep.subr.mxu0 0.0
    %312 = vmatpush1.msra.mxu0 0.0
    %313 = vmatprep.subr.mxu0 0.0
    %314 = vmatpush1.msra.mxu0 0.0
    %315 = vmatprep.subr.mxu0 0.0
    %316 = vmatpush1.msra.mxu0 0.0
    %317 = vmatprep.subr.mxu0 0.0
    %318 = vmatpush1.msra.mxu0 0.0
    %319 = vmatprep.subr.mxu0 0.0
    %320 = vmatpush1.msra.mxu0 0.0
    %321 = vmatprep.subr.mxu0 0.0
    %322 = vmatpush1.msra.mxu0 0.0
    %323 = vmatprep.subr.mxu0 0.0
    %324 = vmatpush1.msra.mxu0 0.0
    %325 = vmatprep.subr.mxu0 0.0
    %326 = vmatpush1.msra.mxu0 0.0
    %327 = vmatprep.subr.mxu0 0.0
    %328 = vmatpush1.msra.mxu0 0.0
    %329 = vmatprep.subr.mxu0 0.0
    %330 = vmatpush1.msra.mxu0 0.0
    %331 = vmatprep.subr.mxu0 0.0
    %332 = vmatpush1.msra.mxu0 0.0
    %333 = vmatprep.subr.mxu0 0.0
    %334 = vmatpush1.msra.mxu0 0.0
    %335 = vmatprep.subr.mxu0 0.0
    %336 = vmatpush1.msra.mxu0 0.0
    %337 = vmatprep.subr.mxu0 0.0
    %338 = vmatpush1.msra.mxu0 0.0
    %339 = vmatprep.subr.mxu0 0.0
    %340 = vmatpush1.msra.mxu0 0.0
    %341 = vmatprep.subr.mxu0 0.0
    %342 = vmatpush1.msra.mxu0 0.0
    %343 = vmatprep.subr.mxu0 0.0
    %344 = vmatpush1.msra.mxu0 0.0
    %345 = vmatprep.subr.mxu0 0.0
    %346 = vmatpush1.msra.mxu0 0.0
    %347 = vmatprep.subr.mxu0 0.0
    %348 = vmatpush1.msra.mxu0 0.0
    %349 = vmatprep.subr.mxu0 0.0
    %350 = vmatpush1.msra.mxu0 0.0
    %351 = vmatprep.subr.mxu0 0.0
    %352 = vmatpush1.msra.mxu0 0.0
    %353 = vmatprep.subr.mxu0 0.0
    %354 = vmatpush1.msra.mxu0 0.0
    %355 = vmatprep.subr.mxu0 0.0
    %356 = vmatpush1.msra.mxu0 0.0
    %357 = vmatprep.subr.mxu0 0.0
    %358 = vmatpush1.msra.mxu0 0.0
    %359 = vmatprep.subr.mxu0 0.0
    %360 = vmatpush1.msra.mxu0 0.0
    %361 = vmatprep.subr.mxu0 0.0
    %362 = vmatpush1.msra.mxu0 0.0
    %363 = vmatprep.subr.mxu0 0.0
    %364 = vmatpush1.msra.mxu0 0.0
    %365 = vmatprep.mubr.f32.mxu0 0.0
    %366 = vmatmul.mubr.f32.gmra.mrb[0].mxu0 %v299
    %v367 = vpop.f32.mrb[0].mxu0
    %v368 = vadd.f32 %v297, %v367
    %v369 = vpop.f32.mrb[0].mxu0
    %370 = vdwg.mxu0
    %v371 = vsel %vm172, %v368, 0.0
    %372 = vadd.xlane.f32.xlu0 %v371
    %v373 = vpop.xlane.xlu0 %372
    %v374 = vmul.f32 %v368, %v368
    %v375 = vsel %vm172, %v374, 0.0
    %376 = vadd.xlane.f32.xlu0 %v375
    %v377 = vpop.xlane.xlu0 %376
    %v378 = vmul.f32 %v373, 0.03125
    %v379 = vmul.f32 %v377, 0.03125
    %v380 = vmul.f32 %v378, %v378
    %v381 = vsub.f32 %v379, %v380
    %v382 = vmax.f32 %v381, 0.0
    %v383 = vsub.f32 %v368, %v378
    %v384 = vadd.f32 %v382, 1e-05
    %v385 = vrsqrt.pop %v384
    %v386 = vmul.f32 %v383, %v385
    %v387 = vmax.f32 %v386, 0.0
    %v388 = vld [vmem:[#allocation10] sm:$0xff]
    %v389 = vld [vmem:[#allocation10 + $0x8] sm:$0xff]
    %v390 = vld [vmem:[#allocation10 + $0x10] sm:$0xff]
    %v391 = vld [vmem:[#allocation10 + $0x18] sm:$0xff]
    %v392 = vld [vmem:[%s6] sm:$0x1]
    %v394 = vlaneseq
    %v395 = vshrl.u32 %v394, 7
    %v396 = vsub.s32 0, %v395
    %v397 = vrot.slane %v392, %v396
    %v400 = vsel %vm172, %v387, 0
    %402 = vmatprep.subr.mxu0 0.0
    %403 = vmatpush1.msra.mxu0 %v388
    %404 = vmatprep.subr.mxu0 0.0
    %405 = vmatpush1.msra.mxu0 %v389
    %406 = vmatprep.subr.mxu0 0.0
    %407 = vmatpush1.msra.mxu0 %v390
    %408 = vmatprep.subr.mxu0 0.0
    %409 = vmatpush1.msra.mxu0 %v391
    %410 = vmatprep.subr.mxu0 0.0
    %411 = vmatpush1.msra.mxu0 0.0
    %412 = vmatprep.subr.mxu0 0.0
    %413 = vmatpush1.msra.mxu0 0.0
    %414 = vmatprep.subr.mxu0 0.0
    %415 = vmatpush1.msra.mxu0 0.0
    %416 = vmatprep.subr.mxu0 0.0
    %417 = vmatpush1.msra.mxu0 0.0
    %418 = vmatprep.subr.mxu0 0.0
    %419 = vmatpush1.msra.mxu0 0.0
    %420 = vmatprep.subr.mxu0 0.0
    %421 = vmatpush1.msra.mxu0 0.0
    %422 = vmatprep.subr.mxu0 0.0
    %423 = vmatpush1.msra.mxu0 0.0
    %424 = vmatprep.subr.mxu0 0.0
    %425 = vmatpush1.msra.mxu0 0.0
    %426 = vmatprep.subr.mxu0 0.0
    %427 = vmatpush1.msra.mxu0 0.0
    %428 = vmatprep.subr.mxu0 0.0
    %429 = vmatpush1.msra.mxu0 0.0
    %430 = vmatprep.subr.mxu0 0.0
    %431 = vmatpush1.msra.mxu0 0.0
    %432 = vmatprep.subr.mxu0 0.0
    %433 = vmatpush1.msra.mxu0 0.0
    %434 = vmatprep.subr.mxu0 0.0
    %435 = vmatpush1.msra.mxu0 0.0
    %436 = vmatprep.subr.mxu0 0.0
    %437 = vmatpush1.msra.mxu0 0.0
    %438 = vmatprep.subr.mxu0 0.0
    %439 = vmatpush1.msra.mxu0 0.0
    %440 = vmatprep.subr.mxu0 0.0
    %441 = vmatpush1.msra.mxu0 0.0
    %442 = vmatprep.subr.mxu0 0.0
    %443 = vmatpush1.msra.mxu0 0.0
    %444 = vmatprep.subr.mxu0 0.0
    %445 = vmatpush1.msra.mxu0 0.0
    %446 = vmatprep.subr.mxu0 0.0
    %447 = vmatpush1.msra.mxu0 0.0
    %448 = vmatprep.subr.mxu0 0.0
    %449 = vmatpush1.msra.mxu0 0.0
    %450 = vmatprep.subr.mxu0 0.0
    %451 = vmatpush1.msra.mxu0 0.0
    %452 = vmatprep.subr.mxu0 0.0
    %453 = vmatpush1.msra.mxu0 0.0
    %454 = vmatprep.subr.mxu0 0.0
    %455 = vmatpush1.msra.mxu0 0.0
    %456 = vmatprep.subr.mxu0 0.0
    %457 = vmatpush1.msra.mxu0 0.0
    %458 = vmatprep.subr.mxu0 0.0
    %459 = vmatpush1.msra.mxu0 0.0
    %460 = vmatprep.subr.mxu0 0.0
    %461 = vmatpush1.msra.mxu0 0.0
    %462 = vmatprep.subr.mxu0 0.0
    %463 = vmatpush1.msra.mxu0 0.0
    %464 = vmatprep.subr.mxu0 0.0
    %465 = vmatpush1.msra.mxu0 0.0
    %466 = vmatprep.mubr.f32.mxu0 0.0
    %467 = vmatmul.mubr.f32.gmra.mrb[0].mxu0 %v400
    %v468 = vpop.f32.mrb[0].mxu0
    %v469 = vadd.f32 %v397, %v468
    %v470 = vpop.f32.mrb[0].mxu0
    %471 = vdwg.mxu0
    %v472 = vmin.f32 %v469, 20.0
    %v473 = vmul.f32 %v472, 1.442695
    %v474 = vpow.pop %v473
    %v475 = vadd.f32 %v474, 1.0
    %v476 = vlog2.pop %v475
    %v477 = vmul.f32 %v476, 0.6931472
    %v478 = vmul.f32 -0.5, %v474
    %v479 = vadd.f32 %v478, 1.0
    %v480 = vmul.f32 %v479, %v474
    %v481 = vand.u32 2147483647, %v474
    %vm482 = vcmp.lt.f32.partialorder %v481, 0.0004427343
    %v483 = vsel %vm482, %v480, %v477
    %vm484 = vcmp.gt.f32.partialorder %v469, 20.0
    %v485 = vsel %vm484, %v469, %v483
    %486 = vst [vmem:[#allocation11] sm:$0xff] %v485
    // Predicated region
    $region50: #{tpu_custom_call.1} parent=1 // pred_check
      _
    $region51: #{tpu_custom_call.1} parent=1 // pred_check_branch
      %488 = sbr.rel (0) target = $region53
    $region52: #{tpu_custom_call.1} parent=1 // pred_region
      %s490 = ssub.s32 128, 128
      %491 = vsyncadd [#allocation4], %s490
      %s493 = sshll.u32 [#allocation11], 4
      %s494 = int_to_ptr.vmem [resolvable:$true] %s493
      %496 = dma.vmem_to_hbm [thread:$0]  %s494, 128, %s7, [#allocation4]
    $region53: #{tpu_custom_call.1} parent=1 // pred_fallthru
      _
    // Predicated region
    $region54: #{tpu_custom_call.1} parent=1 // pred_check
      _
    $region55: #{tpu_custom_call.1} parent=1 // pred_check_branch
      %498 = sbr.rel (0) target = $region57
    $region56: #{tpu_custom_call.1} parent=1 // pred_region
      %499 = dma.done [#allocation4], 128
    $region57: #{tpu_custom_call.1} parent=1 // pred_fallthru
      _
    %500 = vsyncpa [#allocation3], 1
    %501 = vsyncpa [#allocation6], 1
    %502 = vsyncpa [#allocation9], 1
    %503 = vsyncpa [#allocation4], 1

</llo_original>
